<compile_context>
chip_gen: v7x
topology: tpu7x:2x2x1
jax: 0.10.0
libtpu: 0.0.40
codegen_flags: <defaults>
</compile_context>

<pallas_src>
import jax
import jax.numpy as jnp
from jax.experimental import pallas as pl
from jax.experimental.pallas import tpu as pltpu


def time_embedding_kernel(x_ref, w_ref, b_ref, t_ref, o_ref):
    # x_ref: (1, 1, tm) time values (lane-dense rows)
    # w_ref: (H, 1)   emb_weight, transposed to a column
    # b_ref: (H, 1)   emb_bias as a column
    # t_ref: (D, H)   emb_time transposed
    # o_ref: (D, tm)  transposed output tile (lane-dense store)
    x = x_ref[0].astype(jnp.float32)                      # (1, tm)
    w = w_ref[...].astype(jnp.float32)                    # (H, 1)
    b = b_ref[...].astype(jnp.float32)                    # (H, 1)

    h = w * x + b                                         # (H, tm), lane-dense
    # Numerically stable softmax over the hidden axis (sublane axis here).
    h = h - jnp.max(h, axis=0, keepdims=True)
    e = jnp.exp(h)
    denom = jnp.sum(e, axis=0, keepdims=True)             # (1, tm)
    p = e * pl.reciprocal(denom, approx=False)            # exact: keeps 1e-5 fidelity

    # (D, H) @ (H, tm) -> (D, tm); f32 to preserve the module's semantics.
    o_ref[...] = jnp.dot(
        t_ref[...].astype(jnp.float32), p, preferred_element_type=jnp.float32
    ).astype(o_ref.dtype)


def time_embedding(x, emb_weight, emb_bias, emb_time, *, tm=512):
    """x: (B, T, 1) float32. Returns (B, T, D), matching the PyTorch forward."""
    B, T, one = x.shape
    assert one == 1
    H = emb_weight.shape[1]
    D = emb_time.shape[1]
    M = B * T

    # Row tile: multiple of 128 lanes; shrink to the (padded) problem if small.
    tm = max(128, (int(tm) // 128) * 128)
    m_pad = ((M + 127) // 128) * 128
    if m_pad < tm:
        tm = m_pad
    num_tiles = -(-m_pad // tm)          # cdiv
    m_pad = num_tiles * tm

    # Lane-dense x layout: (num_tiles, 1, tm); zero padding in the tail tile is
    # computed (softmax(b) @ T, finite) and discarded below.
    x_rows = jnp.pad(x.reshape(-1), (0, m_pad - M)).reshape(num_tiles, 1, tm)
    w_col = emb_weight.reshape(H, 1)     # (1, H) -> (H, 1)
    b_col = emb_bias.reshape(H, 1)       # (H,)   -> (H, 1)
    t_t = emb_time.T                     # (H, D) -> (D, H)

    out_t = pl.pallas_call(
        time_embedding_kernel,
        out_shape=jax.ShapeDtypeStruct((D, m_pad), x.dtype),
        grid_spec=pltpu.PrefetchScalarGridSpec(
            num_scalar_prefetch=0,
            grid=(num_tiles,),
            in_specs=[
                pl.BlockSpec((1, 1, tm), lambda i: (i, 0, 0)),   # x row tile
                pl.BlockSpec((H, 1), lambda i: (0, 0)),          # emb_weight^T
                pl.BlockSpec((H, 1), lambda i: (0, 0)),          # emb_bias
                pl.BlockSpec((D, H), lambda i: (0, 0)),          # emb_time^T
            ],
            out_specs=pl.BlockSpec((D, tm), lambda i: (0, i)),
        ),
        compiler_params=pltpu.CompilerParams(
            dimension_semantics=("parallel",),   # shards row tiles across v7x TCs
        ),
    )(x_rows, w_col, b_col, t_t)

    # Back to the module's (B, T, D) layout (tiny, one cheap XLA transpose).
    return out_t[:, :M].T.reshape(B, T, D)


if __name__ == "__main__":
    B, T = 2, 8
    hidden_embedding_size = 32
    output_dim = 16

    key = jax.random.PRNGKey(0)
    k_x, k_w, k_b, k_t, k_x2 = jax.random.split(key, 5)

    # Deterministic "randn"-style parameters (shapes match the PyTorch module).
    emb_weight = jax.random.normal(k_w, (1, hidden_embedding_size), dtype=jnp.float32)
    emb_bias = jax.random.normal(k_b, (hidden_embedding_size,), dtype=jnp.float32)
    emb_time = jax.random.normal(
        k_t, (hidden_embedding_size, output_dim), dtype=jnp.float32
    )

    # Small canonical input: (B, T, 1) time values.
    x = jax.random.normal(k_x, (B, T, 1), dtype=jnp.float32)
    out = jax.block_until_ready(time_embedding(x, emb_weight, emb_bias, emb_time))
    ref = jax.nn.softmax(x * emb_weight + emb_bias, axis=2) @ emb_time
    assert out.shape == (B, T, output_dim)
    assert jnp.allclose(out, ref, atol=1e-5, rtol=1e-5)

    # Second check: M not a multiple of the tile -> exercises cdiv grid,
    # zero-padded tail tile, and a multi-step parallel grid.
    B2, T2 = 3, 350  # M = 1050 -> padded to 1536 (3 tiles of 512)
    x2 = jax.random.normal(k_x2, (B2, T2, 1), dtype=jnp.float32)
    out2 = jax.block_until_ready(time_embedding(x2, emb_weight, emb_bias, emb_time))
    ref2 = jax.nn.softmax(x2 * emb_weight + emb_bias, axis=2) @ emb_time
    assert out2.shape == (B2, T2, output_dim)
    assert jnp.allclose(out2, ref2, atol=1e-5, rtol=1e-5)

    print("KERNEL_OK")
</pallas_src>

<mosaic_0001>
module attributes {stable_mosaic.version = 11 : i64} {
  func.func @time_embedding_kernel(%arg0: i32, %arg1: memref<1x1x128xf32, #tpu.memory_space<vmem>>, %arg2: memref<32x1xf32, #tpu.memory_space<vmem>>, %arg3: memref<32x1xf32, #tpu.memory_space<vmem>>, %arg4: memref<16x32xf32, #tpu.memory_space<vmem>>, %arg5: memref<16x128xf32, #tpu.memory_space<vmem>>) attributes {dimension_semantics = [#tpu.dimension_semantics<parallel>], iteration_bounds = array<i64: 1>, scalar_prefetch = 0 : i64, scratch_operands = 0 : i64, tpu.core_type = #tpu.core_type<tc>, window_params = [{transform_indices = @transform_0, window_bounds = array<i64: 1, 1, 128>}, {pipeline_mode = #tpu.pipeline_mode<synchronous>, transform_indices = @transform_1, window_bounds = array<i64: 32, 1>}, {pipeline_mode = #tpu.pipeline_mode<synchronous>, transform_indices = @transform_2, window_bounds = array<i64: 32, 1>}, {pipeline_mode = #tpu.pipeline_mode<synchronous>, transform_indices = @transform_3, window_bounds = array<i64: 16, 32>}, {transform_indices = @transform_4, window_bounds = array<i64: 16, 128>}]} {
    %c0 = arith.constant 0 : index
    %c0_0 = arith.constant 0 : index
    %c0_1 = arith.constant 0 : index
    %0 = vector.load %arg1[%c0, %c0_0, %c0_1] : memref<1x1x128xf32, #tpu.memory_space<vmem>>, vector<1x1x128xf32>
    %1 = vector.shape_cast %0 : vector<1x1x128xf32> to vector<1x128xf32>
    %c0_2 = arith.constant 0 : index
    %c0_3 = arith.constant 0 : index
    %2 = vector.load %arg2[%c0_2, %c0_3] : memref<32x1xf32, #tpu.memory_space<vmem>>, vector<32x1xf32>
    %c0_4 = arith.constant 0 : index
    %c0_5 = arith.constant 0 : index
    %3 = vector.load %arg3[%c0_4, %c0_5] : memref<32x1xf32, #tpu.memory_space<vmem>>, vector<32x1xf32>
    %4 = vector.broadcast %2 : vector<32x1xf32> to vector<32x128xf32>
    %5 = vector.broadcast %1 : vector<1x128xf32> to vector<32x128xf32>
    %6 = arith.mulf %4, %5 : vector<32x128xf32>
    %7 = vector.broadcast %3 : vector<32x1xf32> to vector<32x128xf32>
    %8 = arith.addf %6, %7 : vector<32x128xf32>
    %cst = arith.constant dense<0xFF800000> : vector<128xf32>
    %9 = vector.multi_reduction <maximumf>, %8, %cst [0] : vector<32x128xf32> to vector<128xf32>
    %10 = vector.shape_cast %9 : vector<128xf32> to vector<1x128xf32>
    %11 = vector.broadcast %10 : vector<1x128xf32> to vector<32x128xf32>
    %12 = arith.subf %8, %11 : vector<32x128xf32>
    %13 = math.exp %12 : vector<32x128xf32>
    %cst_6 = arith.constant dense<0.000000e+00> : vector<128xf32>
    %14 = vector.multi_reduction <add>, %13, %cst_6 [0] : vector<32x128xf32> to vector<128xf32>
    %15 = vector.shape_cast %14 : vector<128xf32> to vector<1x128xf32>
    %16 = tpu.reciprocal %15 : vector<1x128xf32> -> vector<1x128xf32>
    %17 = vector.broadcast %16 : vector<1x128xf32> to vector<32x128xf32>
    %18 = arith.mulf %13, %17 : vector<32x128xf32>
    %c0_7 = arith.constant 0 : index
    %c0_8 = arith.constant 0 : index
    %19 = vector.load %arg4[%c0_7, %c0_8] : memref<16x32xf32, #tpu.memory_space<vmem>>, vector<16x32xf32>
    %cst_9 = arith.constant dense<0.000000e+00> : vector<16x128xf32>
    %20 = tpu.matmul %19, %18, %cst_9 {dimension_numbers = #tpu.dot_dimension_numbers<[1], [0], [0], [1], [0, 0, 1, 1], [], []>} : vector<16x32xf32>, vector<32x128xf32>, vector<16x128xf32> -> vector<16x128xf32>
    %c0_10 = arith.constant 0 : index
    %c0_11 = arith.constant 0 : index
    %21 = vector.load %arg5[%c0_10, %c0_11] : memref<16x128xf32, #tpu.memory_space<vmem>>, vector<16x128xf32>
    tpu.vector_store %arg5[%c0_10, %c0_11], %20 {strides = array<i32>} : memref<16x128xf32, #tpu.memory_space<vmem>>, vector<16x128xf32>,
    return
  }
  func.func @transform_0(%arg0: i32) -> (i32, i32, i32) {
    %c0_i32 = arith.constant 0 : i32
    %c0_i32_0 = arith.constant 0 : i32
    %c0_i32_1 = arith.constant 0 : i32
    return %arg0, %c0_i32, %c0_i32_0 : i32, i32, i32
  }
  func.func @transform_1(%arg0: i32) -> (i32, i32) {
    %c0_i32 = arith.constant 0 : i32
    %c0_i32_0 = arith.constant 0 : i32
    %c0_i32_1 = arith.constant 0 : i32
    return %c0_i32, %c0_i32_0 : i32, i32
  }
  func.func @transform_2(%arg0: i32) -> (i32, i32) {
    %c0_i32 = arith.constant 0 : i32
    %c0_i32_0 = arith.constant 0 : i32
    %c0_i32_1 = arith.constant 0 : i32
    return %c0_i32, %c0_i32_0 : i32, i32
  }
  func.func @transform_3(%arg0: i32) -> (i32, i32) {
    %c0_i32 = arith.constant 0 : i32
    %c0_i32_0 = arith.constant 0 : i32
    %c0_i32_1 = arith.constant 0 : i32
    return %c0_i32, %c0_i32_0 : i32, i32
  }
  func.func @transform_4(%arg0: i32) -> (i32, i32) {
    %c0_i32 = arith.constant 0 : i32
    %c0_i32_0 = arith.constant 0 : i32
    return %c0_i32, %arg0 : i32, i32
  }
}

</mosaic_0001>

<llo_original>
// kernel: tpu_custom_call.1
$region0: #{tpu_custom_call.1}
  #allocation0 [shape = 'u32[]', space=smem, size = 0x4, offset = 0x4, fixed_abs, tag = 'smem constant byte address 0x4 - core index']
  #allocation1 [shape = 'u32[144,128]{1,0:T(1,128)}', space=vmem, size = 0x12000, scoped, tag = 'internal scratch']
  %s0 = inlined_call_operand.vmem [shape: f32[1,1,128], index: 0, kind: input, shape index: {}]
  %s1 = inlined_call_operand.vmem [shape: f32[32,1], index: 1, kind: input, shape index: {}]
  %s2 = inlined_call_operand.vmem [shape: f32[32,1], index: 2, kind: input, shape index: {}]
  %s3 = inlined_call_operand.vmem [shape: f32[16,32], index: 3, kind: input, shape index: {}]
  %s4 = inlined_call_operand.hbm [shape: f32[16,128], index: 4, kind: output, shape index: {}]
  %s5 = sld [smem:[#allocation0]]
  $region26: #{tpu_custom_call.1} parent=0
    _
  %s7 = ssub.s32 1, %s5
  %s8 = scalar_select 0, %s7, %s5
  $region1: #{tpu_custom_call.1} parent=0
    #allocation2 [shape = 'u8[8192]{0}', space=vmem, size = 0x2000, scoped, tag = 'output window, operand 0, single buffered']
    #allocation3 [shape = 's32[1]{0}', space=sflag, size = 0x4, scoped, tag = 'scoped memory for tpu_custom_call.1']
    %9 = vsyncpa [#allocation3], 0
    // Predicated region
    $region2: #{tpu_custom_call.1} parent=1 // pred_check
      _
    $region3: #{tpu_custom_call.1} parent=1 // pred_check_branch
      %11 = sbr.rel (0) target = $region5
    $region4: #{tpu_custom_call.1} parent=1 // pred_region
      _
    $region5: #{tpu_custom_call.1} parent=1 // pred_fallthru
      _
    // Predicated region
    $region6: #{tpu_custom_call.1} parent=1 // pred_check
      _
    $region7: #{tpu_custom_call.1} parent=1 // pred_check_branch
      %13 = sbr.rel (0) target = $region9
    $region8: #{tpu_custom_call.1} parent=1 // pred_region
      _
    $region9: #{tpu_custom_call.1} parent=1 // pred_fallthru
      _
    // Predicated region
    $region10: #{tpu_custom_call.1} parent=1 // pred_check
      _
    $region11: #{tpu_custom_call.1} parent=1 // pred_check_branch
      %15 = sbr.rel (0) target = $region13
    $region12: #{tpu_custom_call.1} parent=1 // pred_region
      _
    $region13: #{tpu_custom_call.1} parent=1 // pred_fallthru
      _
    // Predicated region
    $region14: #{tpu_custom_call.1} parent=1 // pred_check
      _
    $region15: #{tpu_custom_call.1} parent=1 // pred_check_branch
      %17 = sbr.rel (0) target = $region17
    $region16: #{tpu_custom_call.1} parent=1 // pred_region
      _
    $region17: #{tpu_custom_call.1} parent=1 // pred_fallthru
      _
    %v18 = vld [vmem:[%s0] sm:$0x1]
    %v19 = vld [vmem:[%s1] sm:$0xff]
    %v20 = vld [vmem:[%s1 + $0x8] sm:$0xff]
    %v21 = vld [vmem:[%s1 + $0x10] sm:$0xff]
    %v22 = vld [vmem:[%s1 + $0x18] sm:$0xff]
    %v23 = vld [vmem:[%s2] sm:$0xff]
    %v24 = vld [vmem:[%s2 + $0x8] sm:$0xff]
    %v25 = vld [vmem:[%s2 + $0x10] sm:$0xff]
    %v26 = vld [vmem:[%s2 + $0x18] sm:$0xff]
    %28 = vset.pattern.permute.xlu0 0
    %29 = vperm.xlu0 %28, %v19
    %v30 = vpop.permute.xlu0 %29
    %33 = vset.pattern.permute.xlu0 0
    %34 = vperm.xlu0 %33, %v20
    %v35 = vpop.permute.xlu0 %34
    %38 = vset.pattern.permute.xlu0 0
    %39 = vperm.xlu0 %38, %v21
    %v40 = vpop.permute.xlu0 %39
    %43 = vset.pattern.permute.xlu0 0
    %44 = vperm.xlu0 %43, %v22
    %v45 = vpop.permute.xlu0 %44
    %v48 = vlaneseq
    %v49 = vshrl.u32 %v48, 7
    %v50 = vsub.s32 0, %v49
    %v51 = vrot.slane %v18, %v50
    %v53 = vmul.f32 %v30, %v51
    %v54 = vmul.f32 %v35, %v51
    %v55 = vmul.f32 %v40, %v51
    %v56 = vmul.f32 %v45, %v51
    %58 = vset.pattern.permute.xlu0 0
    %59 = vperm.xlu0 %58, %v23
    %v60 = vpop.permute.xlu0 %59
    %63 = vset.pattern.permute.xlu0 0
    %64 = vperm.xlu0 %63, %v24
    %v65 = vpop.permute.xlu0 %64
    %68 = vset.pattern.permute.xlu0 0
    %69 = vperm.xlu0 %68, %v25
    %v70 = vpop.permute.xlu0 %69
    %73 = vset.pattern.permute.xlu0 0
    %74 = vperm.xlu0 %73, %v26
    %v75 = vpop.permute.xlu0 %74
    %v77 = vadd.f32 %v53, %v60
    %v78 = vadd.f32 %v54, %v65
    %v79 = vadd.f32 %v55, %v70
    %v80 = vadd.f32 %v56, %v75
    %v81 = vmax.f32 %v77, %v78
    %v82 = vmax.f32 %v79, %v80
    %v83 = vmax.f32 %v81, %v82
    %v84 = vrot.slane %v83, 4
    %v85 = vmax.f32 %v83, %v84
    %v86 = vrot.slane %v85, 2
    %v87 = vmax.f32 %v85, %v86
    %v88 = vrot.slane %v87, 1
    %v89 = vmax.f32 %v87, %v88
    %v90 = vsub.f32 %v77, %v89
    %v91 = vsub.f32 %v78, %v89
    %v92 = vsub.f32 %v79, %v89
    %v93 = vsub.f32 %v80, %v89
    %v94 = vmul.f32 %v90, 1.442695
    %v95 = vpow.pop %v94
    %v96 = vmul.f32 %v91, 1.442695
    %v97 = vpow.pop %v96
    %v98 = vmul.f32 %v92, 1.442695
    %v99 = vpow.pop %v98
    %v100 = vmul.f32 %v93, 1.442695
    %v101 = vpow.pop %v100
    %v102 = vadd.f32 %v95, %v97
    %v103 = vadd.f32 %v102, %v99
    %v104 = vadd.f32 %v103, %v101
    %v105 = vrot.slane %v104, 4
    %v106 = vadd.f32 %v104, %v105
    %v107 = vrot.slane %v106, 2
    %v108 = vadd.f32 %v106, %v107
    %v109 = vrot.slane %v108, 1
    %v110 = vadd.f32 %v108, %v109
    %v111 = vrcp.pop %v110
    %v112 = vmul.f32 %v95, %v111
    %v113 = vmul.f32 %v97, %v111
    %v114 = vmul.f32 %v99, %v111
    %v115 = vmul.f32 %v101, %v111
    %v116 = vld [vmem:[%s3] sm:$0xff]
    %v117 = vld [vmem:[%s3 + $0x8] sm:$0xff]
    %vm118 = vcmask 261120
    %v120 = vsel %vm118, %v116, 0
    %v123 = vsel %vm118, %v117, 0
    %125 = vmatprep.subr.mxu0 0.0
    %126 = vmatpush1.msra.mxu0 %v112
    %127 = vmatprep.subr.mxu0 0.0
    %128 = vmatpush1.msra.mxu0 %v113
    %129 = vmatprep.subr.mxu0 0.0
    %130 = vmatpush1.msra.mxu0 %v114
    %131 = vmatprep.subr.mxu0 0.0
    %132 = vmatpush1.msra.mxu0 %v115
    %133 = vmatprep.subr.mxu0 0.0
    %134 = vmatpush1.msra.mxu0 0.0
    %135 = vmatprep.subr.mxu0 0.0
    %136 = vmatpush1.msra.mxu0 0.0
    %137 = vmatprep.subr.mxu0 0.0
    %138 = vmatpush1.msra.mxu0 0.0
    %139 = vmatprep.subr.mxu0 0.0
    %140 = vmatpush1.msra.mxu0 0.0
    %141 = vmatprep.subr.mxu0 0.0
    %142 = vmatpush1.msra.mxu0 0.0
    %143 = vmatprep.subr.mxu0 0.0
    %144 = vmatpush1.msra.mxu0 0.0
    %145 = vmatprep.subr.mxu0 0.0
    %146 = vmatpush1.msra.mxu0 0.0
    %147 = vmatprep.subr.mxu0 0.0
    %148 = vmatpush1.msra.mxu0 0.0
    %149 = vmatprep.subr.mxu0 0.0
    %150 = vmatpush1.msra.mxu0 0.0
    %151 = vmatprep.subr.mxu0 0.0
    %152 = vmatpush1.msra.mxu0 0.0
    %153 = vmatprep.subr.mxu0 0.0
    %154 = vmatpush1.msra.mxu0 0.0
    %155 = vmatprep.subr.mxu0 0.0
    %156 = vmatpush1.msra.mxu0 0.0
    %157 = vmatprep.subr.mxu0 0.0
    %158 = vmatpush1.msra.mxu0 0.0
    %159 = vmatprep.subr.mxu0 0.0
    %160 = vmatpush1.msra.mxu0 0.0
    %161 = vmatprep.subr.mxu0 0.0
    %162 = vmatpush1.msra.mxu0 0.0
    %163 = vmatprep.subr.mxu0 0.0
    %164 = vmatpush1.msra.mxu0 0.0
    %165 = vmatprep.subr.mxu0 0.0
    %166 = vmatpush1.msra.mxu0 0.0
    %167 = vmatprep.subr.mxu0 0.0
    %168 = vmatpush1.msra.mxu0 0.0
    %169 = vmatprep.subr.mxu0 0.0
    %170 = vmatpush1.msra.mxu0 0.0
    %171 = vmatprep.subr.mxu0 0.0
    %172 = vmatpush1.msra.mxu0 0.0
    %173 = vmatprep.subr.mxu0 0.0
    %174 = vmatpush1.msra.mxu0 0.0
    %175 = vmatprep.subr.mxu0 0.0
    %176 = vmatpush1.msra.mxu0 0.0
    %177 = vmatprep.subr.mxu0 0.0
    %178 = vmatpush1.msra.mxu0 0.0
    %179 = vmatprep.subr.mxu0 0.0
    %180 = vmatpush1.msra.mxu0 0.0
    %181 = vmatprep.subr.mxu0 0.0
    %182 = vmatpush1.msra.mxu0 0.0
    %183 = vmatprep.subr.mxu0 0.0
    %184 = vmatpush1.msra.mxu0 0.0
    %185 = vmatprep.subr.mxu0 0.0
    %186 = vmatpush1.msra.mxu0 0.0
    %187 = vmatprep.subr.mxu0 0.0
    %188 = vmatpush1.msra.mxu0 0.0
    %189 = vmatprep.mubr.f32.mxu0 0.0
    %190 = vmatmul.mubr.f32.gmra.mrb[0].mxu0 %v120
    %v191 = vpop.f32.mrb[0].mxu0
    %v192 = vadd.f32 0.0, %v191
    %v193 = vpop.f32.mrb[0].mxu0
    %194 = vmatprep.mubr.f32.mxu0 0.0
    %195 = vmatmul.mubr.f32.gmra.mrb[0].mxu0 %v123
    %v196 = vpop.f32.mrb[0].mxu0
    %v197 = vadd.f32 0.0, %v196
    %v198 = vpop.f32.mrb[0].mxu0
    %199 = vdwg.mxu0
    %200 = vst [vmem:[#allocation2] sm:$0xff] %v192
    %201 = vst [vmem:[#allocation2 + $0x8] sm:$0xff] %v197
    // Predicated region
    $region18: #{tpu_custom_call.1} parent=1 // pred_check
      _
    $region19: #{tpu_custom_call.1} parent=1 // pred_check_branch
      %203 = sbr.rel (0) target = $region21
    $region20: #{tpu_custom_call.1} parent=1 // pred_region
      %s205 = ssub.s32 256, 256
      %206 = vsyncadd [#allocation3], %s205
      %s207 = sshll.u32 [#allocation2], 4
      %s208 = int_to_ptr.vmem [resolvable:$true] %s207
      %213 = dma.vmem_to_hbm [thread:$0]  %s208, 256, %s4, [#allocation3], 128, 128, 8
    $region21: #{tpu_custom_call.1} parent=1 // pred_fallthru
      _
    // Predicated region
    $region22: #{tpu_custom_call.1} parent=1 // pred_check
      _
    $region23: #{tpu_custom_call.1} parent=1 // pred_check_branch
      %215 = sbr.rel (0) target = $region25
    $region24: #{tpu_custom_call.1} parent=1 // pred_region
      %216 = dma.done [#allocation3], 256
    $region25: #{tpu_custom_call.1} parent=1 // pred_fallthru
      _
    %217 = vsyncpa [#allocation3], 1

</llo_original>
